<compile_context>
chip_gen: v7x
topology: tpu7x:2x2x1
jax: 0.10.0
libtpu: 0.0.40
codegen_flags: <defaults>
</compile_context>

<pallas_src>
import jax
import jax.numpy as jnp
from jax.experimental import pallas as pl
from jax.experimental.pallas import tpu as pltpu

LANE = 128
SUBLANE_BF16 = 16  # bf16 packs 16 rows per sublane-packed vreg


def _round_up(n, m):
    return ((n + m - 1) // m) * m


def mlp_kernel(x_ref, w1_ref, b1_ref, w2_ref, b2_ref, o_ref):
    # cast the streamed x tile to bf16 on the VPU (avoids a separate XLA cast op)
    x = x_ref[...].astype(jnp.bfloat16)
    # layer1: bf16 x bf16 -> f32 accumulation on the MXU
    h = jnp.dot(x, w1_ref[...], preferred_element_type=jnp.float32)
    # bias + ReLU in f32
    h = jnp.maximum(h + b1_ref[...], 0.0)
    # layer2: bf16 x bf16 -> f32; N padded to 128 lanes -> lane-dense store
    y = jnp.dot(h.astype(jnp.bfloat16), w2_ref[...],
                preferred_element_type=jnp.float32)
    o_ref[...] = (y + b2_ref[...]).astype(o_ref.dtype)


def prepare_params(w1, b1, w2, b2):
    """One-time weight prep: pad output dim to 128 lanes, cast matmul operands
    to bf16, biases to f32. Call once; reuse the result for every forward."""
    H = w1.shape[1]
    D_out = w2.shape[1]
    n_pad = _round_up(max(D_out, LANE), LANE)
    w1_c = w1.astype(jnp.bfloat16)                                  # (D_in, H)
    b1_c = jnp.reshape(b1, (1, H)).astype(jnp.float32)              # (1, H)
    w2p = jnp.zeros((H, n_pad), jnp.bfloat16).at[:, :D_out].set(
        w2.astype(jnp.bfloat16))                                    # (H, n_pad)
    b2p = jnp.zeros((1, n_pad), jnp.float32).at[:, :D_out].set(
        jnp.reshape(b2, (1, D_out)).astype(jnp.float32))            # (1, n_pad)
    return {"w1": w1_c, "b1": b1_c, "w2p": w2p, "b2p": b2p, "d_out": D_out}


def mlp_forward(x, params, *, block_m=512):
    """x: (B, D_in) float32. params: output of prepare_params().
    Returns the squeezed output, matching torch's `x.squeeze()`."""
    w1_c, b1_c, w2p, b2p = params["w1"], params["b1"], params["w2p"], params["b2p"]
    d_out = params["d_out"]
    B, D_in = x.shape
    H = w1_c.shape[1]
    n_pad = w2p.shape[1]

    # ---- batch tiling: tm multiple of 16 (bf16 packing); >=2 grid steps when
    # possible so the "parallel" axis shards across v7x's two TensorCores ----
    b_align = _round_up(B, SUBLANE_BF16)
    if b_align >= 2 * SUBLANE_BF16:
        tm = min(block_m, _round_up(pl.cdiv(b_align, 2), SUBLANE_BF16))
    else:
        tm = b_align
    # keep the f32 hidden intermediate (tm, H) to a few MiB (avoid spill-bound)
    max_tm_for_h = max(SUBLANE_BF16,
                       ((4 << 20) // (4 * H)) // SUBLANE_BF16 * SUBLANE_BF16)
    tm = min(tm, max_tm_for_h)

    b_pad = _round_up(B, tm)
    x_p = x if b_pad == B else jnp.zeros((b_pad, D_in), x.dtype).at[:B].set(x)
    grid = (b_pad // tm,)

    # ---- explicit VMEM budget (raised only when needed; capped for v7x) ----
    resident = (w1_c.size * 2 + w2p.size * 2 + b1_c.size * 4 + b2p.size * 4)
    streamed = 2 * tm * D_in * x_p.dtype.itemsize + 2 * tm * n_pad * 4
    needed = int((resident + streamed) * 1.2) + (2 << 20)
    vmem_limit = None
    if needed > (32 << 20):
        vmem_limit = min(needed, 60 << 20)  # stay under v7x's 64 MiB physical VMEM

    cost = pl.CostEstimate(
        flops=2 * b_pad * (D_in * H + H * n_pad),
        transcendentals=0,
        bytes_accessed=(x_p.size * x_p.dtype.itemsize
                        + w1_c.size * 2 + w2p.size * 2
                        + b1_c.size * 4 + b2p.size * 4
                        + b_pad * n_pad * 4),
    )

    out = pl.pallas_call(
        mlp_kernel,
        out_shape=jax.ShapeDtypeStruct((b_pad, n_pad), jnp.float32),
        grid_spec=pltpu.PrefetchScalarGridSpec(
            num_scalar_prefetch=0,
            grid=grid,
            in_specs=[
                pl.BlockSpec((tm, D_in), lambda i: (i, 0)),   # x: streamed over batch
                pl.BlockSpec((D_in, H), lambda i: (0, 0)),    # w1 (bf16): VMEM-resident
                pl.BlockSpec((1, H), lambda i: (0, 0)),       # b1: resident
                pl.BlockSpec((H, n_pad), lambda i: (0, 0)),   # w2 (bf16, padded): resident
                pl.BlockSpec((1, n_pad), lambda i: (0, 0)),   # b2 (padded): resident
            ],
            out_specs=pl.BlockSpec((tm, n_pad), lambda i: (i, 0)),
        ),
        compiler_params=pltpu.CompilerParams(
            dimension_semantics=("parallel",),
            vmem_limit_bytes=vmem_limit,
        ),
        cost_estimate=cost,
    )(x_p, w1_c, b1_c, w2p, b2p)

    out = out[:B, :d_out]
    # squeeze() in torch drops all size-1 dims; do the same (glue, not hot path)
    return jnp.squeeze(out)


def init_params(key, input_size, hidden_size, output_size, dtype=jnp.float32):
    # Deterministic init mimicking nn.Linear's uniform(-1/sqrt(fan_in), ...).
    k1, k2, k3, k4 = jax.random.split(key, 4)
    lim1 = 1.0 / (input_size ** 0.5)
    lim2 = 1.0 / (hidden_size ** 0.5)
    # stored pre-transposed: (in, out)
    w1 = jax.random.uniform(k1, (input_size, hidden_size), dtype, -lim1, lim1)
    b1 = jax.random.uniform(k2, (1, hidden_size), dtype, -lim1, lim1)
    w2 = jax.random.uniform(k3, (hidden_size, output_size), dtype, -lim2, lim2)
    b2 = jax.random.uniform(k4, (1, output_size), dtype, -lim2, lim2)
    return w1, b1, w2, b2


if __name__ == "__main__":
    input_size, hidden_size, output_size = 16, 32, 1
    batch = 8

    key = jax.random.PRNGKey(0)
    kx, kp = jax.random.split(key)
    x = jax.random.normal(kx, (batch, input_size), jnp.float32)
    w1, b1, w2, b2 = init_params(kp, input_size, hidden_size, output_size)

    # one-time param prep (padding + bf16 casts hoisted out of the forward)
    params = jax.block_until_ready(prepare_params(w1, b1, w2, b2))

    out = mlp_forward(x, params)
    out = jax.block_until_ready(out)

    # Reference in plain JAX with the same bf16 rounding of both matmuls'
    # operands (accumulation in f32, bias/ReLU in f32), matching the kernel.
    xr = x.astype(jnp.bfloat16)
    w1r = w1.astype(jnp.bfloat16)
    h = jnp.maximum(
        jnp.dot(xr, w1r, preferred_element_type=jnp.float32) + b1, 0.0)
    ref = jnp.dot(h.astype(jnp.bfloat16), w2.astype(jnp.bfloat16),
                  preferred_element_type=jnp.float32) + b2
    ref = jnp.squeeze(ref)

    assert out.shape == (batch,), out.shape
    assert jnp.allclose(out, ref, atol=2e-3, rtol=2e-3), \
        float(jnp.max(jnp.abs(out - ref)))

    print("KERNEL_OK")
</pallas_src>

<mosaic_0001>
module attributes {stable_mosaic.version = 11 : i64} {
  func.func @mlp_kernel(%arg0: i32, %arg1: memref<16x16xf32, #tpu.memory_space<vmem>>, %arg2: memref<16x32xbf16, #tpu.memory_space<vmem>>, %arg3: memref<1x32xf32, #tpu.memory_space<vmem>>, %arg4: memref<32x128xbf16, #tpu.memory_space<vmem>>, %arg5: memref<1x128xf32, #tpu.memory_space<vmem>>, %arg6: memref<16x128xf32, #tpu.memory_space<vmem>>) attributes {dimension_semantics = [#tpu.dimension_semantics<parallel>], iteration_bounds = array<i64: 1>, scalar_prefetch = 0 : i64, scratch_operands = 0 : i64, tpu.core_type = #tpu.core_type<tc>, window_params = [{transform_indices = @transform_0, window_bounds = array<i64: 16, 16>}, {pipeline_mode = #tpu.pipeline_mode<synchronous>, transform_indices = @transform_1, window_bounds = array<i64: 16, 32>}, {pipeline_mode = #tpu.pipeline_mode<synchronous>, transform_indices = @transform_2, window_bounds = array<i64: 1, 32>}, {pipeline_mode = #tpu.pipeline_mode<synchronous>, transform_indices = @transform_3, window_bounds = array<i64: 32, 128>}, {pipeline_mode = #tpu.pipeline_mode<synchronous>, transform_indices = @transform_4, window_bounds = array<i64: 1, 128>}, {transform_indices = @transform_5, window_bounds = array<i64: 16, 128>}]} {
    %c0 = arith.constant 0 : index
    %c0_0 = arith.constant 0 : index
    %0 = vector.load %arg1[%c0, %c0_0] : memref<16x16xf32, #tpu.memory_space<vmem>>, vector<16x16xf32>
    %1 = arith.truncf %0 : vector<16x16xf32> to vector<16x16xbf16>
    %c0_1 = arith.constant 0 : index
    %c0_2 = arith.constant 0 : index
    %2 = vector.load %arg2[%c0_1, %c0_2] : memref<16x32xbf16, #tpu.memory_space<vmem>>, vector<16x32xbf16>
    %cst = arith.constant dense<0.000000e+00> : vector<16x32xf32>
    %3 = tpu.matmul %1, %2, %cst {dimension_numbers = #tpu.dot_dimension_numbers<[1], [0], [0], [1], [0, 0, 1, 1], [], []>} : vector<16x16xbf16>, vector<16x32xbf16>, vector<16x32xf32> -> vector<16x32xf32>
    %c0_3 = arith.constant 0 : index
    %c0_4 = arith.constant 0 : index
    %4 = vector.load %arg3[%c0_3, %c0_4] : memref<1x32xf32, #tpu.memory_space<vmem>>, vector<1x32xf32>
    %5 = vector.broadcast %4 : vector<1x32xf32> to vector<16x32xf32>
    %6 = arith.addf %3, %5 : vector<16x32xf32>
    %cst_5 = arith.constant 0.000000e+00 : f32
    %7 = vector.broadcast %cst_5 : f32 to vector<16x32xf32>
    %8 = arith.maximumf %6, %7 : vector<16x32xf32>
    %9 = arith.truncf %8 : vector<16x32xf32> to vector<16x32xbf16>
    %c0_6 = arith.constant 0 : index
    %c0_7 = arith.constant 0 : index
    %10 = vector.load %arg4[%c0_6, %c0_7] : memref<32x128xbf16, #tpu.memory_space<vmem>>, vector<32x128xbf16>
    %cst_8 = arith.constant dense<0.000000e+00> : vector<16x128xf32>
    %11 = tpu.matmul %9, %10, %cst_8 {dimension_numbers = #tpu.dot_dimension_numbers<[1], [0], [0], [1], [0, 0, 1, 1], [], []>} : vector<16x32xbf16>, vector<32x128xbf16>, vector<16x128xf32> -> vector<16x128xf32>
    %c0_9 = arith.constant 0 : index
    %c0_10 = arith.constant 0 : index
    %12 = vector.load %arg5[%c0_9, %c0_10] : memref<1x128xf32, #tpu.memory_space<vmem>>, vector<1x128xf32>
    %13 = vector.broadcast %12 : vector<1x128xf32> to vector<16x128xf32>
    %14 = arith.addf %11, %13 : vector<16x128xf32>
    %c0_11 = arith.constant 0 : index
    %c0_12 = arith.constant 0 : index
    %15 = vector.load %arg6[%c0_11, %c0_12] : memref<16x128xf32, #tpu.memory_space<vmem>>, vector<16x128xf32>
    tpu.vector_store %arg6[%c0_11, %c0_12], %14 {strides = array<i32>} : memref<16x128xf32, #tpu.memory_space<vmem>>, vector<16x128xf32>,
    return
  }
  func.func @transform_0(%arg0: i32) -> (i32, i32) {
    %c0_i32 = arith.constant 0 : i32
    %c0_i32_0 = arith.constant 0 : i32
    return %arg0, %c0_i32 : i32, i32
  }
  func.func @transform_1(%arg0: i32) -> (i32, i32) {
    %c0_i32 = arith.constant 0 : i32
    %c0_i32_0 = arith.constant 0 : i32
    %c0_i32_1 = arith.constant 0 : i32
    return %c0_i32, %c0_i32_0 : i32, i32
  }
  func.func @transform_2(%arg0: i32) -> (i32, i32) {
    %c0_i32 = arith.constant 0 : i32
    %c0_i32_0 = arith.constant 0 : i32
    %c0_i32_1 = arith.constant 0 : i32
    return %c0_i32, %c0_i32_0 : i32, i32
  }
  func.func @transform_3(%arg0: i32) -> (i32, i32) {
    %c0_i32 = arith.constant 0 : i32
    %c0_i32_0 = arith.constant 0 : i32
    %c0_i32_1 = arith.constant 0 : i32
    return %c0_i32, %c0_i32_0 : i32, i32
  }
  func.func @transform_4(%arg0: i32) -> (i32, i32) {
    %c0_i32 = arith.constant 0 : i32
    %c0_i32_0 = arith.constant 0 : i32
    %c0_i32_1 = arith.constant 0 : i32
    return %c0_i32, %c0_i32_0 : i32, i32
  }
  func.func @transform_5(%arg0: i32) -> (i32, i32) {
    %c0_i32 = arith.constant 0 : i32
    %c0_i32_0 = arith.constant 0 : i32
    return %arg0, %c0_i32 : i32, i32
  }
}

</mosaic_0001>

<llo_original>
// kernel: tpu_custom_call.1
$region0: #{tpu_custom_call.1}
  #allocation0 [shape = 'u32[]', space=smem, size = 0x4, offset = 0x4, fixed_abs, tag = 'smem constant byte address 0x4 - core index']
  #allocation1 [shape = 'u32[144,128]{1,0:T(1,128)}', space=vmem, size = 0x12000, scoped, tag = 'internal scratch']
  %s0 = inlined_call_operand.hbm [shape: f32[16,16], index: 0, kind: input, shape index: {}]
  %s1 = inlined_call_operand.hbm [shape: bf16[16,32], index: 1, kind: input, shape index: {}]
  %s2 = inlined_call_operand.vmem [shape: f32[1,32], index: 2, kind: input, shape index: {}]
  %s3 = inlined_call_operand.hbm [shape: bf16[32,128], index: 3, kind: input, shape index: {}]
  %s4 = inlined_call_operand.vmem [shape: f32[1,128], index: 4, kind: input, shape index: {}]
  %s5 = inlined_call_operand.hbm [shape: f32[16,128], index: 5, kind: output, shape index: {}]
  %s6 = sld [smem:[#allocation0]]
  $region42: #{tpu_custom_call.1} parent=0
    _
  %s8 = ssub.s32 1, %s6
  %s9 = scalar_select 0, %s8, %s6
  $region1: #{tpu_custom_call.1} parent=0
    #allocation2 [shape = 'u8[8192]{0}', space=vmem, size = 0x2000, scoped, tag = 'input window, operand 0, single buffered']
    #allocation3 [shape = 's32[1]{0}', space=sflag, size = 0x4, scoped, tag = 'scoped memory for tpu_custom_call.1']
    #allocation4 [shape = 's32[1]{0}', space=sflag, size = 0x4, scoped, tag = 'scoped memory for tpu_custom_call.1']
    #allocation5 [shape = 'u8[4096]{0}', space=vmem, size = 0x1000, scoped, tag = 'input window, operand 1, single buffered']
    #allocation6 [shape = 's32[1]{0}', space=sflag, size = 0x4, scoped, tag = 'scoped memory for tpu_custom_call.1']
    #allocation7 [shape = 'u8[8192]{0}', space=vmem, size = 0x2000, scoped, tag = 'input window, operand 3, single buffered']
    #allocation8 [shape = 'u8[8192]{0}', space=vmem, size = 0x2000, scoped, tag = 'output window, operand 0, single buffered']
    %10 = vsyncpa [#allocation3], 0
    %11 = vsyncpa [#allocation6], 0
    %12 = vsyncpa [#allocation4], 0
    // Predicated region
    $region2: #{tpu_custom_call.1} parent=1 // pred_check
      _
    $region3: #{tpu_custom_call.1} parent=1 // pred_check_branch
      %14 = sbr.rel (0) target = $region5
    $region4: #{tpu_custom_call.1} parent=1 // pred_region
      %s16 = ssub.s32 256, 256
      %17 = vsyncadd [#allocation3], %s16
      %s18 = sshll.u32 [#allocation2], 4
      %s19 = int_to_ptr.vmem [resolvable:$true] %s18
      %24 = dma.hbm_to_vmem [thread:$0]  %s0, 256, %s19, [#allocation3], 128, 128, 8
    $region5: #{tpu_custom_call.1} parent=1 // pred_fallthru
      _
    // Predicated region
    $region6: #{tpu_custom_call.1} parent=1 // pred_check
      _
    $region7: #{tpu_custom_call.1} parent=1 // pred_check_branch
      %26 = sbr.rel (0) target = $region9
    $region8: #{tpu_custom_call.1} parent=1 // pred_region
      %s28 = ssub.s32 128, 128
      %29 = vsyncadd [#allocation6], %s28
      %s30 = sshll.u32 [#allocation5], 4
      %s31 = int_to_ptr.vmem [resolvable:$true] %s30
      %36 = dma.hbm_to_vmem [thread:$0]  %s1, 128, %s31, [#allocation6], 64, 64, 4
    $region9: #{tpu_custom_call.1} parent=1 // pred_fallthru
      _
    // Predicated region
    $region10: #{tpu_custom_call.1} parent=1 // pred_check
      _
    $region11: #{tpu_custom_call.1} parent=1 // pred_check_branch
      %38 = sbr.rel (0) target = $region13
    $region12: #{tpu_custom_call.1} parent=1 // pred_region
      _
    $region13: #{tpu_custom_call.1} parent=1 // pred_fallthru
      _
    // Predicated region
    $region14: #{tpu_custom_call.1} parent=1 // pred_check
      _
    $region15: #{tpu_custom_call.1} parent=1 // pred_check_branch
      %40 = sbr.rel (0) target = $region17
    $region16: #{tpu_custom_call.1} parent=1 // pred_region
      %s42 = ssub.s32 256, 256
      %43 = vsyncadd [#allocation6], %s42
      %s44 = sshll.u32 [#allocation7], 4
      %s45 = int_to_ptr.vmem [resolvable:$true] %s44
      %50 = dma.hbm_to_vmem [thread:$0]  %s3, 256, %s45, [#allocation6], 64, 64, 4
    $region17: #{tpu_custom_call.1} parent=1 // pred_fallthru
      _
    // Predicated region
    $region18: #{tpu_custom_call.1} parent=1 // pred_check
      _
    $region19: #{tpu_custom_call.1} parent=1 // pred_check_branch
      %52 = sbr.rel (0) target = $region21
    $region20: #{tpu_custom_call.1} parent=1 // pred_region
      _
    $region21: #{tpu_custom_call.1} parent=1 // pred_fallthru
      _
    // Predicated region
    $region22: #{tpu_custom_call.1} parent=1 // pred_check
      _
    $region23: #{tpu_custom_call.1} parent=1 // pred_check_branch
      %54 = sbr.rel (0) target = $region25
    $region24: #{tpu_custom_call.1} parent=1 // pred_region
      %55 = dma.done [#allocation3], 256
    $region25: #{tpu_custom_call.1} parent=1 // pred_fallthru
      _
    // Predicated region
    $region26: #{tpu_custom_call.1} parent=1 // pred_check
      _
    $region27: #{tpu_custom_call.1} parent=1 // pred_check_branch
      %57 = sbr.rel (0) target = $region29
    $region28: #{tpu_custom_call.1} parent=1 // pred_region
      %58 = dma.done [#allocation6], 128
    $region29: #{tpu_custom_call.1} parent=1 // pred_fallthru
      _
    // Predicated region
    $region30: #{tpu_custom_call.1} parent=1 // pred_check
      _
    $region31: #{tpu_custom_call.1} parent=1 // pred_check_branch
      %60 = sbr.rel (0) target = $region33
    $region32: #{tpu_custom_call.1} parent=1 // pred_region
      %61 = dma.done [#allocation6], 256
    $region33: #{tpu_custom_call.1} parent=1 // pred_fallthru
      _
    %v63 = vld [vmem:[#allocation2] sm:$0xff]
    %v64 = vld [vmem:[#allocation2 + $0x8] sm:$0xff]
    %v65 = vpack.c.bf16 %v64, %v63
    %v66 = vld [vmem:[#allocation5] sm:$0xf]
    %v67 = vld [vmem:[#allocation5 + $0x4] sm:$0xf]
    %v68 = vld [vmem:[%s2] sm:$0x1]
    %v70 = vlaneseq
    %v71 = vshrl.u32 %v70, 7
    %v72 = vsub.s32 0, %v71
    %v73 = vrot.slane %v68, %v72
    %v77 = vunpack.c.l.b16 %v66
    %v78 = vunpack.c.l.b16 %v67
    %v79 = vpack.c.b16 %v78, %v77
    %vm81 = vcmask 130048
    %v83 = vsel %vm81, %v65, 0
    %85 = vmatprep.subr.bf16.mxu0 0
    %86 = vmatpush1.bf16.msra.mxu0 %v79
    %87 = vmatprep.subr.bf16.mxu0 0
    %88 = vmatpush1.bf16.msra.mxu0 0
    %89 = vmatprep.subr.bf16.mxu0 0
    %90 = vmatpush1.bf16.msra.mxu0 0
    %91 = vmatprep.subr.bf16.mxu0 0
    %92 = vmatpush1.bf16.msra.mxu0 0
    %93 = vmatprep.subr.bf16.mxu0 0
    %94 = vmatpush1.bf16.msra.mxu0 0
    %95 = vmatprep.subr.bf16.mxu0 0
    %96 = vmatpush1.bf16.msra.mxu0 0
    %97 = vmatprep.subr.bf16.mxu0 0
    %98 = vmatpush1.bf16.msra.mxu0 0
    %99 = vmatprep.subr.bf16.mxu0 0
    %100 = vmatpush1.bf16.msra.mxu0 0
    %101 = vmatprep.subr.bf16.mxu0 0
    %102 = vmatpush1.bf16.msra.mxu0 0
    %103 = vmatprep.subr.bf16.mxu0 0
    %104 = vmatpush1.bf16.msra.mxu0 0
    %105 = vmatprep.subr.bf16.mxu0 0
    %106 = vmatpush1.bf16.msra.mxu0 0
    %107 = vmatprep.subr.bf16.mxu0 0
    %108 = vmatpush1.bf16.msra.mxu0 0
    %109 = vmatprep.subr.bf16.mxu0 0
    %110 = vmatpush1.bf16.msra.mxu0 0
    %111 = vmatprep.subr.bf16.mxu0 0
    %112 = vmatpush1.bf16.msra.mxu0 0
    %113 = vmatprep.subr.bf16.mxu0 0
    %114 = vmatpush1.bf16.msra.mxu0 0
    %115 = vmatprep.subr.bf16.mxu0 0
    %116 = vmatpush1.bf16.msra.mxu0 0
    %117 = vmatprep.mubr.bf16.mxu0 0
    %118 = vmatmul.mubr.bf16.gmra.mrb[0].mxu0 %v83
    %v119 = vpop.f32.mrb[0].mxu0
    %v120 = vadd.f32 %v73, %v119
    %v121 = vpop.f32.mrb[0].mxu0
    %v122 = vpop.f32.mrb[0].mxu0
    %v123 = vadd.f32 %v73, %v122
    %v124 = vpop.f32.mrb[0].mxu0
    %125 = vdwg.mxu0
    %v126 = vmax.f32 %v120, 0.0
    %v127 = vmax.f32 %v123, 0.0
    %v128 = vpack.c.bf16 %v127, %v126
    %v129 = vld [vmem:[#allocation7] sm:$0xf]
    %v130 = vld [vmem:[#allocation7 + $0x4] sm:$0xf]
    %v131 = vld [vmem:[#allocation7 + $0x8] sm:$0xf]
    %v132 = vld [vmem:[#allocation7 + $0xc] sm:$0xf]
    %v133 = vld [vmem:[%s4] sm:$0x1]
    %v135 = vlaneseq
    %v136 = vshrl.u32 %v135, 7
    %v137 = vsub.s32 0, %v136
    %v138 = vrot.slane %v133, %v137
    %v144 = vunpack.c.l.b16 %v129
    %v145 = vunpack.c.l.b16 %v130
    %v146 = vunpack.c.l.b16 %v131
    %v147 = vunpack.c.l.b16 %v132
    %v148 = vpack.c.b16 %v145, %v144
    %v149 = vpack.c.b16 %v147, %v146
    %vm152 = vcmask 261120
    %v154 = vsel %vm152, %v128, 0
    %156 = vmatprep.subr.bf16.mxu0 0
    %157 = vmatpush1.bf16.msra.mxu0 %v148
    %158 = vmatprep.subr.bf16.mxu0 0
    %159 = vmatpush1.bf16.msra.mxu0 %v149
    %160 = vmatprep.subr.bf16.mxu0 0
    %161 = vmatpush1.bf16.msra.mxu0 0
    %162 = vmatprep.subr.bf16.mxu0 0
    %163 = vmatpush1.bf16.msra.mxu0 0
    %164 = vmatprep.subr.bf16.mxu0 0
    %165 = vmatpush1.bf16.msra.mxu0 0
    %166 = vmatprep.subr.bf16.mxu0 0
    %167 = vmatpush1.bf16.msra.mxu0 0
    %168 = vmatprep.subr.bf16.mxu0 0
    %169 = vmatpush1.bf16.msra.mxu0 0
    %170 = vmatprep.subr.bf16.mxu0 0
    %171 = vmatpush1.bf16.msra.mxu0 0
    %172 = vmatprep.subr.bf16.mxu0 0
    %173 = vmatpush1.bf16.msra.mxu0 0
    %174 = vmatprep.subr.bf16.mxu0 0
    %175 = vmatpush1.bf16.msra.mxu0 0
    %176 = vmatprep.subr.bf16.mxu0 0
    %177 = vmatpush1.bf16.msra.mxu0 0
    %178 = vmatprep.subr.bf16.mxu0 0
    %179 = vmatpush1.bf16.msra.mxu0 0
    %180 = vmatprep.subr.bf16.mxu0 0
    %181 = vmatpush1.bf16.msra.mxu0 0
    %182 = vmatprep.subr.bf16.mxu0 0
    %183 = vmatpush1.bf16.msra.mxu0 0
    %184 = vmatprep.subr.bf16.mxu0 0
    %185 = vmatpush1.bf16.msra.mxu0 0
    %186 = vmatprep.subr.bf16.mxu0 0
    %187 = vmatpush1.bf16.msra.mxu0 0
    %188 = vmatprep.mubr.bf16.mxu0 0
    %189 = vmatmul.mubr.bf16.gmra.mrb[0].mxu0 %v154
    %v190 = vpop.f32.mrb[0].mxu0
    %v191 = vadd.f32 %v138, %v190
    %v192 = vpop.f32.mrb[0].mxu0
    %v193 = vpop.f32.mrb[0].mxu0
    %v194 = vadd.f32 %v138, %v193
    %v195 = vpop.f32.mrb[0].mxu0
    %196 = vdwg.mxu0
    %197 = vst [vmem:[#allocation8] sm:$0xff] %v191
    %198 = vst [vmem:[#allocation8 + $0x8] sm:$0xff] %v194
    // Predicated region
    $region34: #{tpu_custom_call.1} parent=1 // pred_check
      _
    $region35: #{tpu_custom_call.1} parent=1 // pred_check_branch
      %200 = sbr.rel (0) target = $region37
    $region36: #{tpu_custom_call.1} parent=1 // pred_region
      %s202 = ssub.s32 256, 256
      %203 = vsyncadd [#allocation4], %s202
      %s204 = sshll.u32 [#allocation8], 4
      %s205 = int_to_ptr.vmem [resolvable:$true] %s204
      %210 = dma.vmem_to_hbm [thread:$0]  %s205, 256, %s5, [#allocation4], 128, 128, 8
    $region37: #{tpu_custom_call.1} parent=1 // pred_fallthru
      _
    // Predicated region
    $region38: #{tpu_custom_call.1} parent=1 // pred_check
      _
    $region39: #{tpu_custom_call.1} parent=1 // pred_check_branch
      %212 = sbr.rel (0) target = $region41
    $region40: #{tpu_custom_call.1} parent=1 // pred_region
      %213 = dma.done [#allocation4], 256
    $region41: #{tpu_custom_call.1} parent=1 // pred_fallthru
      _
    %214 = vsyncpa [#allocation3], 1
    %215 = vsyncpa [#allocation6], 1
    %216 = vsyncpa [#allocation4], 1

</llo_original>
